<compile_context>
chip_gen: v5e
topology: v5e:2x2
jax: 0.10.0
libtpu: 0.0.40
codegen_flags: <defaults>
</compile_context>

<pallas_src>
import jax
import jax.numpy as jnp
from jax import lax
from jax.experimental import pallas as pl
from jax.experimental.pallas import tpu as pltpu


def _round_up(v, m):
    return (v + m - 1) // m * m


def _vmem_capacity_bytes():
    try:
        return int(pltpu.get_tpu_info().vmem_capacity_bytes)
    except Exception:
        return 64 << 20  # conservative fallback (v7x per-TC size)


def _make_stream_kernel(n_valid, tile_n, nt_half):
    """One streaming pass over one core's share of the patches.

    Per core it produces: raw attention scores (lane-dense), the unnormalized
    online-softmax accumulator acc = sum_i exp(s_i - m) * x_i, and the running
    softmax statistics m (max) and l (denominator at scale m).
    """

    def kernel(x_ref, w1_ref, b1_ref, w2_ref,            # inputs
               scores_ref, acc_ref, m_ref, l_ref,        # outputs (per-core blocks)
               m_sc, l_sc, acc_sc):                      # per-core scratch
        c = pl.program_id(0)
        t = pl.program_id(1)

        @pl.when(t == 0)
        def _init():
            m_sc[...] = jnp.full_like(m_sc, -jnp.inf)
            l_sc[...] = jnp.zeros_like(l_sc)
            acc_sc[...] = jnp.zeros_like(acc_sc)

        # Global patch offset of this tile.  UNclamped: for the duplicate tile a
        # core may get when the tile count is odd, start >= n_valid and the
        # masks below zero its entire contribution.
        start = (c * nt_half + t) * tile_n

        x = x_ref[...]                                    # (tile_n, D), native dtype
        # Zero rows past the end of the (unpadded) bag before the pooled matmul.
        row = lax.broadcasted_iota(jnp.int32, (tile_n, 1), 0) + start
        xz = jnp.where(row < n_valid, x, jnp.zeros_like(x))

        # Linear(D->H) + tanh.  Native-dtype operands (bf16 MXU path for bf16
        # inputs), f32 accumulation.
        h = jnp.tanh(
            jnp.dot(xz, w1_ref[...], preferred_element_type=jnp.float32)
            + b1_ref[...])                                # (tile_n, Hp) f32

        # Linear(H->1), produced directly lane-dense as a (1, tile_n) row by
        # contracting h's lane axis against the resident w2 row.  b2 omitted:
        # softmax is shift-invariant, so it has no effect on either output.
        # TODO(synk): verify with pl.lower_as_mlir that this lowers to a native
        # transposed-RHS matmul and not an XLU transpose of the (tile_n, Hp) h.
        s = lax.dot_general(
            w2_ref[...], h, (((1,), (1,)), ((), ())),
            preferred_element_type=jnp.float32)           # (1, tile_n)

        # Mask tail / duplicate-tile columns (also removes any NaN that garbage
        # tail rows could have produced in the score path).
        col = lax.broadcasted_iota(jnp.int32, s.shape, 1) + start
        s = jnp.where(col < n_valid, s, jnp.float32(-jnp.inf))
        scores_ref[...] = s.reshape(scores_ref.shape)     # raw scores, lane-dense

        # Online softmax accumulation.  m_safe guards the all-padding-tile case
        # (m still -inf) against -inf - -inf = NaN.
        m_prev = m_sc[...]                                # (1, 1)
        m_new = jnp.maximum(m_prev, jnp.max(s, axis=1, keepdims=True))
        m_safe = jnp.maximum(m_new, jnp.float32(-1e30))
        alpha = jnp.exp(m_prev - m_safe)                  # 0 on the first tile
        e = jnp.exp(s - m_safe)                           # (1, tile_n); 0 on padding
        l_sc[...] = alpha * l_sc[...] + jnp.sum(e, axis=1, keepdims=True)
        # Weighted sum of the patch tile on the MXU: (1, tile_n) @ (tile_n, D).
        acc_sc[...] = alpha * acc_sc[...] + jnp.dot(
            e.astype(x_ref.dtype), xz, preferred_element_type=jnp.float32)
        m_sc[...] = m_new

        @pl.when(t == pl.num_programs(1) - 1)
        def _finalize():
            acc_ref[...] = acc_sc[...].reshape(acc_ref.shape)
            m_ref[...] = m_sc[...].reshape(m_ref.shape)
            l_ref[...] = l_sc[...].reshape(l_ref.shape)

    return kernel


def attention_mil(patch_features, w1, b1, w2, b2=None, *, tile_n=2048):
    """AttentionMIL forward.

    patch_features: (N, D); w1: (D, H); b1: (H,); w2: (H, 1) (or (H,)/(1, H)).
    b2 is mathematically irrelevant to both module outputs (softmax shift
    invariance) and is dropped.
    Returns (slide_representation (D,) float32, attention_weights (N, 1) float32).
    """
    del b2
    n, d = patch_features.shape
    h = w1.shape[1]
    hp = _round_up(h, 128)
    x_itemsize = jnp.dtype(patch_features.dtype).itemsize

    # ---- tile size & VMEM budget, derived from the device's VMEM capacity ----
    vmem_cap = _vmem_capacity_bytes()
    # x streaming cost per tile ~ 3x (double-buffered DMA + one masked VMEM copy).
    x_budget = max(6 << 20, min(vmem_cap // 3, 48 << 20))
    cap = max(128, (x_budget // (3 * d * x_itemsize)) // 128 * 128)
    tile_n = max(128, min(_round_up(tile_n, 128), cap, _round_up(n, 128)))

    nt = pl.cdiv(n, tile_n)              # number of real patch tiles
    n_split = 2 if nt >= 2 else 1        # split the reduction across (up to) 2 TCs
    nt_half = pl.cdiv(nt, n_split)       # tiles per core
    n_half_pad = nt_half * tile_n

    # Small weight tensors: pad H to a lane multiple (cheap); D stays unpadded.
    w1p = jnp.pad(w1, ((0, 0), (0, hp - h))).astype(patch_features.dtype)
    b1p = jnp.pad(b1.reshape(1, h).astype(jnp.float32), ((0, 0), (0, hp - h)))
    w2p = jnp.pad(w2.reshape(1, h).astype(jnp.float32), ((0, 0), (0, hp - h)))

    # VMEM usage estimate -> explicit scoped-VMEM limit (below physical capacity).
    est = (3 * tile_n * d * x_itemsize          # streamed x (2 bufs) + masked copy
           + 2 * d * hp * x_itemsize            # resident w1 (+ buffering headroom)
           + 2 * tile_n * hp * 4                # h / tanh intermediate
           + 8 * tile_n * 4                     # scores / e temporaries + out block
           + 8 * d * 4                          # acc scratch + acc out
           + (2 << 20))                         # misc headroom
    upper = max(24 << 20, min(vmem_cap - (8 << 20), 112 << 20))
    vmem_limit = int(min(max(int(est * 1.4), 32 << 20), upper))

    grid_spec = pltpu.PrefetchScalarGridSpec(
        num_scalar_prefetch=0,
        grid=(n_split, nt_half),
        in_specs=[
            # x: streamed over patches, UNPADDED (lane dim = full D).  Block
            # index clamped so the duplicate tile of an odd split never DMAs
            # out of bounds; that tile is fully masked inside the kernel.
            pl.BlockSpec((tile_n, d),
                         lambda c, t: (jnp.minimum(c * nt_half + t, nt - 1), 0)),
            pl.BlockSpec((d, hp), lambda c, t: (0, 0)),   # w1: resident
            pl.BlockSpec((1, hp), lambda c, t: (0, 0)),   # b1: resident
            pl.BlockSpec((1, hp), lambda c, t: (0, 0)),   # w2 row: resident
        ],
        out_specs=(
            pl.BlockSpec((1, 1, tile_n), lambda c, t: (c, 0, t)),  # raw scores
            pl.BlockSpec((1, 1, d), lambda c, t: (c, 0, 0)),       # partial acc
            pl.BlockSpec((1, 1, 1), lambda c, t: (c, 0, 0)),       # partial max m
            pl.BlockSpec((1, 1, 1), lambda c, t: (c, 0, 0)),       # partial denom l
        ),
        scratch_shapes=[
            pltpu.VMEM((1, 1), jnp.float32),     # running m (per core)
            pltpu.VMEM((1, 1), jnp.float32),     # running l (per core)
            pltpu.VMEM((1, d), jnp.float32),     # weighted-sum accumulator (per core)
        ],
    )

    scores, acc, m_c, l_c = pl.pallas_call(
        _make_stream_kernel(n, tile_n, nt_half),
        out_shape=(
            jax.ShapeDtypeStruct((n_split, 1, n_half_pad), jnp.float32),
            jax.ShapeDtypeStruct((n_split, 1, d), jnp.float32),
            jax.ShapeDtypeStruct((n_split, 1, 1), jnp.float32),
            jax.ShapeDtypeStruct((n_split, 1, 1), jnp.float32),
        ),
        grid_spec=grid_spec,
        compiler_params=pltpu.CompilerParams(
            dimension_semantics=("parallel", "arbitrary"),
            vmem_limit_bytes=vmem_limit,
        ),
    )(patch_features, w1p, b1p, w2p)

    # Tiny cross-core combine + normalization in plain XLA (a few KB of work):
    # log-sum-exp merge of the per-core (m, l, acc) partials, then
    # attn = exp(scores - M) / L over the raw score row.
    m_vec = m_c[:, 0, 0]
    l_vec = l_c[:, 0, 0]
    acc_mat = acc[:, 0, :]
    m_tot = jnp.max(m_vec)
    scale = jnp.where(jnp.isfinite(m_vec), jnp.exp(m_vec - m_tot), 0.0)
    l_tot = jnp.sum(l_vec * scale)
    slide = jnp.sum(acc_mat * scale[:, None], axis=0) / l_tot        # (D,) f32
    scores_flat = scores.reshape(-1)[:n]
    attn = (jnp.exp(scores_flat - m_tot) / l_tot).reshape(n, 1)      # (N, 1) f32
    return slide, attn


def _reference(patch_features, w1, b1, w2, b2):
    h = jnp.tanh(patch_features @ w1 + b1)
    s = h @ w2 + b2
    w = jax.nn.softmax(s, axis=0)
    return jnp.sum(w * patch_features, axis=0), w


if __name__ == "__main__":
    def _run_case(key, n, d, hdim, tile_n):
        kx, k1, kb1, k2, kb2 = jax.random.split(key, 5)
        x = jax.random.normal(kx, (n, d), dtype=jnp.float32)
        # PyTorch Linear weights stored transposed: (in, out).
        w1 = jax.random.normal(k1, (d, hdim), dtype=jnp.float32) * 0.1
        b1 = jax.random.normal(kb1, (hdim,), dtype=jnp.float32) * 0.1
        w2 = jax.random.normal(k2, (hdim, 1), dtype=jnp.float32) * 0.1
        b2 = jax.random.normal(kb2, (1,), dtype=jnp.float32) * 0.1

        slide, attn = attention_mil(x, w1, b1, w2, b2, tile_n=tile_n)
        jax.block_until_ready((slide, attn))

        slide_ref, attn_ref = _reference(x, w1, b1, w2, b2)
        assert slide.shape == (d,) and attn.shape == (n, 1)
        assert jnp.allclose(slide, slide_ref, atol=1e-4, rtol=1e-4), \
            float(jnp.max(jnp.abs(slide - slide_ref)))
        assert jnp.allclose(attn, attn_ref, atol=1e-4, rtol=1e-4), \
            float(jnp.max(jnp.abs(attn - attn_ref)))

    root = jax.random.PRNGKey(0)
    k_a, k_b = jax.random.split(root)
    # N not a multiple of the tile, D not lane-aligned -> tail masking + 2-way split.
    _run_case(k_a, 200, 192, 128, 128)
    # Odd tile count -> exercises the clamped duplicate tile on core 1; H < 128
    # -> exercises the hidden-dim padding of the small weight tensors.
    _run_case(k_b, 300, 160, 96, 128)

    print("KERNEL_OK")
</pallas_src>

<mosaic_0001>
module attributes {stable_mosaic.version = 11 : i64} {
  func.func @kernel(%arg0: i32, %arg1: i32, %arg2: memref<128x192xf32, #tpu.memory_space<vmem>>, %arg3: memref<192x128xf32, #tpu.memory_space<vmem>>, %arg4: memref<1x128xf32, #tpu.memory_space<vmem>>, %arg5: memref<1x128xf32, #tpu.memory_space<vmem>>, %arg6: memref<1x1x128xf32, #tpu.memory_space<vmem>>, %arg7: memref<1x1x192xf32, #tpu.memory_space<vmem>>, %arg8: memref<1x1x1xf32, #tpu.memory_space<vmem>>, %arg9: memref<1x1x1xf32, #tpu.memory_space<vmem>>, %arg10: memref<1x1xf32, #tpu.memory_space<vmem>>, %arg11: memref<1x1xf32, #tpu.memory_space<vmem>>, %arg12: memref<1x192xf32, #tpu.memory_space<vmem>>) attributes {dimension_semantics = [#tpu.dimension_semantics<parallel>, #tpu.dimension_semantics<arbitrary>], iteration_bounds = array<i64: 2, 1>, scalar_prefetch = 0 : i64, scratch_operands = 3 : i64, tpu.core_type = #tpu.core_type<tc>, window_params = [{transform_indices = @transform_0, window_bounds = array<i64: 128, 192>}, {pipeline_mode = #tpu.pipeline_mode<synchronous>, transform_indices = @transform_1, window_bounds = array<i64: 192, 128>}, {pipeline_mode = #tpu.pipeline_mode<synchronous>, transform_indices = @transform_2, window_bounds = array<i64: 1, 128>}, {pipeline_mode = #tpu.pipeline_mode<synchronous>, transform_indices = @transform_3, window_bounds = array<i64: 1, 128>}, {transform_indices = @transform_4, window_bounds = array<i64: 1, 1, 128>}, {transform_indices = @transform_5, window_bounds = array<i64: 1, 1, 192>}, {transform_indices = @transform_6, window_bounds = array<i64: 1, 1, 1>}, {transform_indices = @transform_7, window_bounds = array<i64: 1, 1, 1>}]} {
    %c0_i32 = arith.constant 0 : i32
    %0 = arith.cmpi eq, %arg1, %c0_i32 : i32
    %1 = arith.extui %0 : i1 to i32
    %c0_i32_0 = arith.constant 0 : i32
    %2 = arith.cmpi ne, %1, %c0_i32_0 : i32
    scf.if %2 {
      %cst_33 = arith.constant 0xFF800000 : f32
      %60 = vector.broadcast %cst_33 : f32 to vector<1x1xf32>
      %c0_34 = arith.constant 0 : index
      %c0_35 = arith.constant 0 : index
      %61 = vector.load %arg10[%c0_34, %c0_35] : memref<1x1xf32, #tpu.memory_space<vmem>>, vector<1x1xf32>
      tpu.vector_store %arg10[%c0_34, %c0_35], %60 {strides = array<i32>} : memref<1x1xf32, #tpu.memory_space<vmem>>, vector<1x1xf32>,
      %cst_36 = arith.constant 0.000000e+00 : f32
      %62 = vector.broadcast %cst_36 : f32 to vector<1x1xf32>
      %c0_37 = arith.constant 0 : index
      %c0_38 = arith.constant 0 : index
      %63 = vector.load %arg11[%c0_37, %c0_38] : memref<1x1xf32, #tpu.memory_space<vmem>>, vector<1x1xf32>
      tpu.vector_store %arg11[%c0_37, %c0_38], %62 {strides = array<i32>} : memref<1x1xf32, #tpu.memory_space<vmem>>, vector<1x1xf32>,
      %cst_39 = arith.constant 0.000000e+00 : f32
      %64 = vector.broadcast %cst_39 : f32 to vector<1x192xf32>
      %c0_40 = arith.constant 0 : index
      %c0_41 = arith.constant 0 : index
      %65 = vector.load %arg12[%c0_40, %c0_41] : memref<1x192xf32, #tpu.memory_space<vmem>>, vector<1x192xf32>
      tpu.vector_store %arg12[%c0_40, %c0_41], %64 {strides = array<i32>} : memref<1x192xf32, #tpu.memory_space<vmem>>, vector<1x192xf32>,
    } else {
    }
    %c1_i32 = arith.constant 1 : i32
    %3 = arith.muli %arg0, %c1_i32 : i32
    %4 = arith.addi %3, %arg1 : i32
    %c128_i32 = arith.constant 128 : i32
    %5 = arith.muli %4, %c128_i32 : i32
    %c0 = arith.constant 0 : index
    %c0_1 = arith.constant 0 : index
    %6 = vector.load %arg2[%c0, %c0_1] : memref<128x192xf32, #tpu.memory_space<vmem>>, vector<128x192xf32>
    %7 = tpu.iota {dimensions = array<i32: 0>} : vector<128x1xi32>
    %8 = vector.broadcast %5 : i32 to vector<128x1xi32>
    %9 = arith.addi %7, %8 : vector<128x1xi32>
    %c200_i32 = arith.constant 200 : i32
    %10 = vector.broadcast %c200_i32 : i32 to vector<128x1xi32>
    %11 = arith.cmpi slt, %9, %10 : vector<128x1xi32>
    %cst = arith.constant 0.000000e+00 : f32
    %12 = vector.broadcast %cst : f32 to vector<128x192xf32>
    %13 = vector.shape_cast %11 : vector<128x1xi1> to vector<128x1xi1>
    %14 = vector.broadcast %13 : vector<128x1xi1> to vector<128x192xi1>
    %15 = arith.select %14, %6, %12 : vector<128x192xi1>, vector<128x192xf32>
    %c0_2 = arith.constant 0 : index
    %c0_3 = arith.constant 0 : index
    %16 = vector.load %arg3[%c0_2, %c0_3] : memref<192x128xf32, #tpu.memory_space<vmem>>, vector<192x128xf32>
    %cst_4 = arith.constant dense<0.000000e+00> : vector<128x128xf32>
    %17 = tpu.matmul %15, %16, %cst_4 {dimension_numbers = #tpu.dot_dimension_numbers<[1], [0], [0], [1], [0, 0, 1, 1], [], []>} : vector<128x192xf32>, vector<192x128xf32>, vector<128x128xf32> -> vector<128x128xf32>
    %c0_5 = arith.constant 0 : index
    %c0_6 = arith.constant 0 : index
    %18 = vector.load %arg4[%c0_5, %c0_6] : memref<1x128xf32, #tpu.memory_space<vmem>>, vector<1x128xf32>
    %19 = vector.broadcast %18 : vector<1x128xf32> to vector<128x128xf32>
    %20 = arith.addf %17, %19 : vector<128x128xf32>
    %21 = math.tanh %20 : vector<128x128xf32>
    %c0_7 = arith.constant 0 : index
    %c0_8 = arith.constant 0 : index
    %22 = vector.load %arg5[%c0_7, %c0_8] : memref<1x128xf32, #tpu.memory_space<vmem>>, vector<1x128xf32>
    %cst_9 = arith.constant dense<0.000000e+00> : vector<1x128xf32>
    %23 = tpu.matmul %22, %21, %cst_9 {dimension_numbers = #tpu.dot_dimension_numbers<[1], [1], [0], [0], [0, 0, 1, 0], [], []>} : vector<1x128xf32>, vector<128x128xf32>, vector<1x128xf32> -> vector<1x128xf32>
    %24 = tpu.iota {dimensions = array<i32: 1>} : vector<1x128xi32>
    %25 = vector.broadcast %5 : i32 to vector<1x128xi32>
    %26 = arith.addi %24, %25 : vector<1x128xi32>
    %c200_i32_10 = arith.constant 200 : i32
    %27 = vector.broadcast %c200_i32_10 : i32 to vector<1x128xi32>
    %28 = arith.cmpi slt, %26, %27 : vector<1x128xi32>
    %cst_11 = arith.constant 0xFF800000 : f32
    %29 = vector.broadcast %cst_11 : f32 to vector<1x128xf32>
    %30 = arith.select %28, %23, %29 : vector<1x128xi1>, vector<1x128xf32>
    %31 = vector.shape_cast %30 : vector<1x128xf32> to vector<1x1x128xf32>
    %c0_12 = arith.constant 0 : index
    %c0_13 = arith.constant 0 : index
    %c0_14 = arith.constant 0 : index
    %32 = vector.load %arg6[%c0_12, %c0_13, %c0_14] : memref<1x1x128xf32, #tpu.memory_space<vmem>>, vector<1x1x128xf32>
    tpu.vector_store %arg6[%c0_12, %c0_13, %c0_14], %31 {strides = array<i32>} : memref<1x1x128xf32, #tpu.memory_space<vmem>>, vector<1x1x128xf32>,
    %c0_15 = arith.constant 0 : index
    %c0_16 = arith.constant 0 : index
    %33 = vector.load %arg10[%c0_15, %c0_16] : memref<1x1xf32, #tpu.memory_space<vmem>>, vector<1x1xf32>
    %cst_17 = arith.constant dense<0xFF800000> : vector<1xf32>
    %34 = vector.multi_reduction <maximumf>, %30, %cst_17 [1] : vector<1x128xf32> to vector<1xf32>
    %35 = vector.shape_cast %34 : vector<1xf32> to vector<1x1xf32>
    %36 = arith.maximumf %33, %35 : vector<1x1xf32>
    %cst_18 = arith.constant -1.000000e+30 : f32
    %37 = vector.broadcast %cst_18 : f32 to vector<1x1xf32>
    %38 = arith.maximumf %36, %37 : vector<1x1xf32>
    %39 = arith.subf %33, %38 : vector<1x1xf32>
    %40 = math.exp %39 : vector<1x1xf32>
    %41 = vector.broadcast %38 : vector<1x1xf32> to vector<1x128xf32>
    %42 = arith.subf %30, %41 : vector<1x128xf32>
    %43 = math.exp %42 : vector<1x128xf32>
    %c0_19 = arith.constant 0 : index
    %c0_20 = arith.constant 0 : index
    %44 = vector.load %arg11[%c0_19, %c0_20] : memref<1x1xf32, #tpu.memory_space<vmem>>, vector<1x1xf32>
    %45 = arith.mulf %40, %44 : vector<1x1xf32>
    %cst_21 = arith.constant dense<0.000000e+00> : vector<1xf32>
    %46 = vector.multi_reduction <add>, %43, %cst_21 [1] : vector<1x128xf32> to vector<1xf32>
    %47 = vector.shape_cast %46 : vector<1xf32> to vector<1x1xf32>
    %48 = arith.addf %45, %47 : vector<1x1xf32>
    %c0_22 = arith.constant 0 : index
    %c0_23 = arith.constant 0 : index
    %49 = vector.load %arg11[%c0_22, %c0_23] : memref<1x1xf32, #tpu.memory_space<vmem>>, vector<1x1xf32>
    tpu.vector_store %arg11[%c0_22, %c0_23], %48 {strides = array<i32>} : memref<1x1xf32, #tpu.memory_space<vmem>>, vector<1x1xf32>,
    %c0_24 = arith.constant 0 : index
    %c0_25 = arith.constant 0 : index
    %50 = vector.load %arg12[%c0_24, %c0_25] : memref<1x192xf32, #tpu.memory_space<vmem>>, vector<1x192xf32>
    %51 = vector.broadcast %40 : vector<1x1xf32> to vector<1x192xf32>
    %52 = arith.mulf %51, %50 : vector<1x192xf32>
    %cst_26 = arith.constant dense<0.000000e+00> : vector<1x192xf32>
    %53 = tpu.matmul %43, %15, %cst_26 {dimension_numbers = #tpu.dot_dimension_numbers<[1], [0], [0], [1], [0, 0, 1, 1], [], []>} : vector<1x128xf32>, vector<128x192xf32>, vector<1x192xf32> -> vector<1x192xf32>
    %54 = arith.addf %52, %53 : vector<1x192xf32>
    %c0_27 = arith.constant 0 : index
    %c0_28 = arith.constant 0 : index
    %55 = vector.load %arg12[%c0_27, %c0_28] : memref<1x192xf32, #tpu.memory_space<vmem>>, vector<1x192xf32>
    tpu.vector_store %arg12[%c0_27, %c0_28], %54 {strides = array<i32>} : memref<1x192xf32, #tpu.memory_space<vmem>>, vector<1x192xf32>,
    %c0_29 = arith.constant 0 : index
    %c0_30 = arith.constant 0 : index
    %56 = vector.load %arg10[%c0_29, %c0_30] : memref<1x1xf32, #tpu.memory_space<vmem>>, vector<1x1xf32>
    tpu.vector_store %arg10[%c0_29, %c0_30], %36 {strides = array<i32>} : memref<1x1xf32, #tpu.memory_space<vmem>>, vector<1x1xf32>,
    %c0_i32_31 = arith.constant 0 : i32
    %57 = arith.cmpi eq, %arg1, %c0_i32_31 : i32
    %58 = arith.extui %57 : i1 to i32
    %c0_i32_32 = arith.constant 0 : i32
    %59 = arith.cmpi ne, %58, %c0_i32_32 : i32
    scf.if %59 {
      %c0_33 = arith.constant 0 : index
      %c0_34 = arith.constant 0 : index
      %60 = vector.load %arg12[%c0_33, %c0_34] : memref<1x192xf32, #tpu.memory_space<vmem>>, vector<1x192xf32>
      %61 = vector.shape_cast %60 : vector<1x192xf32> to vector<1x1x192xf32>
      %c0_35 = arith.constant 0 : index
      %c0_36 = arith.constant 0 : index
      %c0_37 = arith.constant 0 : index
      %62 = vector.load %arg7[%c0_35, %c0_36, %c0_37] : memref<1x1x192xf32, #tpu.memory_space<vmem>>, vector<1x1x192xf32>
      tpu.vector_store %arg7[%c0_35, %c0_36, %c0_37], %61 {strides = array<i32>} : memref<1x1x192xf32, #tpu.memory_space<vmem>>, vector<1x1x192xf32>,
      %c0_38 = arith.constant 0 : index
      %c0_39 = arith.constant 0 : index
      %63 = vector.load %arg10[%c0_38, %c0_39] : memref<1x1xf32, #tpu.memory_space<vmem>>, vector<1x1xf32>
      %64 = vector.shape_cast %63 : vector<1x1xf32> to vector<1x1x1xf32>
      %c0_40 = arith.constant 0 : index
      %c0_41 = arith.constant 0 : index
      %c0_42 = arith.constant 0 : index
      %65 = vector.load %arg8[%c0_40, %c0_41, %c0_42] : memref<1x1x1xf32, #tpu.memory_space<vmem>>, vector<1x1x1xf32>
      tpu.vector_store %arg8[%c0_40, %c0_41, %c0_42], %64 {strides = array<i32>} : memref<1x1x1xf32, #tpu.memory_space<vmem>>, vector<1x1x1xf32>,
      %c0_43 = arith.constant 0 : index
      %c0_44 = arith.constant 0 : index
      %66 = vector.load %arg11[%c0_43, %c0_44] : memref<1x1xf32, #tpu.memory_space<vmem>>, vector<1x1xf32>
      %67 = vector.shape_cast %66 : vector<1x1xf32> to vector<1x1x1xf32>
      %c0_45 = arith.constant 0 : index
      %c0_46 = arith.constant 0 : index
      %c0_47 = arith.constant 0 : index
      %68 = vector.load %arg9[%c0_45, %c0_46, %c0_47] : memref<1x1x1xf32, #tpu.memory_space<vmem>>, vector<1x1x1xf32>
      tpu.vector_store %arg9[%c0_45, %c0_46, %c0_47], %67 {strides = array<i32>} : memref<1x1x1xf32, #tpu.memory_space<vmem>>, vector<1x1x1xf32>,
    } else {
    }
    return
  }
  func.func @transform_0(%arg0: i32, %arg1: i32) -> (i32, i32) {
    %c1_i32 = arith.constant 1 : i32
    %0 = arith.muli %arg0, %c1_i32 : i32
    %1 = arith.addi %0, %arg1 : i32
    %c1_i32_0 = arith.constant 1 : i32
    %2 = arith.minsi %1, %c1_i32_0 : i32
    %c0_i32 = arith.constant 0 : i32
    %c0_i32_1 = arith.constant 0 : i32
    return %2, %c0_i32 : i32, i32
  }
  func.func @transform_1(%arg0: i32, %arg1: i32) -> (i32, i32) {
    %c0_i32 = arith.constant 0 : i32
    %c0_i32_0 = arith.constant 0 : i32
    %c0_i32_1 = arith.constant 0 : i32
    return %c0_i32, %c0_i32_0 : i32, i32
  }
  func.func @transform_2(%arg0: i32, %arg1: i32) -> (i32, i32) {
    %c0_i32 = arith.constant 0 : i32
    %c0_i32_0 = arith.constant 0 : i32
    %c0_i32_1 = arith.constant 0 : i32
    return %c0_i32, %c0_i32_0 : i32, i32
  }
  func.func @transform_3(%arg0: i32, %arg1: i32) -> (i32, i32) {
    %c0_i32 = arith.constant 0 : i32
    %c0_i32_0 = arith.constant 0 : i32
    %c0_i32_1 = arith.constant 0 : i32
    return %c0_i32, %c0_i32_0 : i32, i32
  }
  func.func @transform_4(%arg0: i32, %arg1: i32) -> (i32, i32, i32) {
    %c0_i32 = arith.constant 0 : i32
    %c0_i32_0 = arith.constant 0 : i32
    return %arg0, %c0_i32, %arg1 : i32, i32, i32
  }
  func.func @transform_5(%arg0: i32, %arg1: i32) -> (i32, i32, i32) {
    %c0_i32 = arith.constant 0 : i32
    %c0_i32_0 = arith.constant 0 : i32
    %c0_i32_1 = arith.constant 0 : i32
    return %arg0, %c0_i32, %c0_i32_0 : i32, i32, i32
  }
  func.func @transform_6(%arg0: i32, %arg1: i32) -> (i32, i32, i32) {
    %c0_i32 = arith.constant 0 : i32
    %c0_i32_0 = arith.constant 0 : i32
    %c0_i32_1 = arith.constant 0 : i32
    return %arg0, %c0_i32, %c0_i32_0 : i32, i32, i32
  }
  func.func @transform_7(%arg0: i32, %arg1: i32) -> (i32, i32, i32) {
    %c0_i32 = arith.constant 0 : i32
    %c0_i32_0 = arith.constant 0 : i32
    %c0_i32_1 = arith.constant 0 : i32
    return %arg0, %c0_i32, %c0_i32_0 : i32, i32, i32
  }
}

</mosaic_0001>

<llo_original>
// kernel: tpu_custom_call.1
$region0: #{tpu_custom_call.1}
  #allocation0 [shape = 'u32[]', space=smem, size = 0x4, offset = 0x4, fixed_abs, tag = 'smem constant byte address 0x4 - core index']
  #allocation1 [shape = 'u32[72,128]{1,0:T(1,128)}', space=vmem, size = 0x9000, scoped, tag = 'internal scratch']
  #allocation2 [shape = 'f32[1,1]{1,0:T(1,128)}', space=vmem, size = 0x200, scoped, tag = 'scratch operand']
  #allocation3 [shape = 'f32[1,1]{1,0:T(1,128)}', space=vmem, size = 0x200, scoped, tag = 'scratch operand']
  #allocation4 [shape = 'f32[1,192]{1,0:T(1,128)}', space=vmem, size = 0x400, scoped, tag = 'scratch operand']
  %s0 = inlined_call_operand.vmem [shape: f32[200,192], index: 0, kind: input, shape index: {}]
  %s1 = inlined_call_operand.vmem [shape: f32[192,128], index: 1, kind: input, shape index: {}]
  %s2 = inlined_call_operand.vmem [shape: f32[1,128], index: 2, kind: input, shape index: {}]
  %s3 = inlined_call_operand.vmem [shape: f32[1,128], index: 3, kind: input, shape index: {}]
  %s4 = inlined_call_operand.hbm [shape: f32[2,1,128], index: 4, kind: output, shape index: {0}]
  %s5 = inlined_call_operand.hbm [shape: f32[2,1,192], index: 5, kind: output, shape index: {1}]
  %s6 = inlined_call_operand.vmem [shape: f32[2,1,1], index: 6, kind: output, shape index: {2}]
  %s7 = inlined_call_operand.vmem [shape: f32[2,1,1], index: 7, kind: output, shape index: {3}]
  %8 = xla_tuple %s4, %s5, %s6, %s7
  %s9 = sld [smem:[#allocation0]]
  $region81: #{tpu_custom_call.1} parent=0
    _
  %s11 = ssub.s32 1, %s9
  %s12 = scalar_select 0, %s11, %s9
  $region1: #{tpu_custom_call.1} parent=0
    #allocation5 [shape = 'u8[1024]{0}', space=vmem, size = 0x400, scoped, tag = 'output window, operand 0']
    #allocation6 [shape = 's32[2]{0}', space=sflag, size = 0x8, scoped, tag = 'scoped memory for tpu_custom_call.1']
    #allocation7 [shape = 'u8[2048]{0}', space=vmem, size = 0x800, scoped, tag = 'output window, operand 1']
    #allocation8 [shape = 's32[2]{0}', space=sflag, size = 0x8, scoped, tag = 'scoped memory for tpu_custom_call.1']
    %13 = vsyncpa [#allocation6], 0
    %s14 = scalar_lea.sflag [#allocation6], 1
    %15 = vsyncpa %s14, 0
    %16 = vsyncpa [#allocation8], 0
    %s17 = scalar_lea.sflag [#allocation8], 1
    %18 = vsyncpa %s17, 0
    loop: start=0, step=1, limit=4
    $region2: #{tpu_custom_call.1} parent=1 // loop_pre_header
      _
    $region3: #{tpu_custom_call.1} parent=1 // loop_header
      %s20 = sphi 0, %s24
      %p21 = scmp.ge.s32.totalorder %s20, 4
      %s27 = sphi 0, %s39
      %s28 = sphi 0, %s35
      %s29 = sphi 0, %s27
      %s30 = sphi 0, %s28
      %s31 = sphi 0, %s29
      %s32 = sphi 0, %s30
      %s48 = sphi 0, %s50
      %s51 = sphi 0, %s48
      %s52 = sphi 0, %s51
      %s68 = sphi 0, %s52
      %s72 = sphi 0, %s72
      %s74 = sphi 0, %s72
      %s75 = sphi 0, %s74
      %s89 = sphi 0, %s75
      %s93 = sphi 0, %s93
      %s95 = sphi 0, %s93
      %s96 = sphi 0, %s95
      %s110 = sphi 0, %s96
      %s114 = sphi 0, %s114
      %s116 = sphi 0, %s114
      %s117 = sphi 0, %s116
      %s131 = sphi 0, %s117
      %s139 = sphi 0, %s141
      %s142 = sphi 0, %s139
      %s143 = sphi 0, %s142
      %s159 = sphi 0, %s143
      %s165 = sphi 0, %s167
      %s168 = sphi 0, %s165
      %s169 = sphi 0, %s168
      %s185 = sphi 0, %s169
      %s191 = sphi 0, %s193
      %s194 = sphi 0, %s191
      %s195 = sphi 0, %s194
      %s211 = sphi 0, %s195
      %s217 = sphi 0, %s219
      %s220 = sphi 0, %s217
      %s221 = sphi 0, %s220
      %s237 = sphi 0, %s221
    $region4: #{tpu_custom_call.1} parent=1 // loop_header_branch
      %23 = sbr.rel (%p21) target = $region8
    $region5: #{tpu_custom_call.1} parent=1 // loop_body
      %s25 = ssub.s32 %s20, 1
      %s26 = ssub.s32 %s20, 2
      %s33 = sadd.s32 1, %s28
      %p34 = scmp.ge.s32.totalorder %s33, 1
      %s35 = scalar_select %p34, 0, %s33
      %s36 = sadd.s32 1, %s27
      %s37 = scalar_select %p34, %s36, %s27
      %p38 = scmp.ge.s32.totalorder %s37, 2
      %s39 = scalar_select %p38, 0, %s37
      %s40 = sadd.s32 %s27, %s28
      %p41 = scmp.lt.s32.totalorder %s40, 1
      %s42 = scalar_select %p41, %s40, 1
      %s43 = sadd.s32 %s39, %s35
      %p44 = scmp.lt.s32.totalorder %s43, 1
      %s45 = scalar_select %p44, %s43, 1
      %s46 = ssub.s32 %s42, %s45
      %p47 = scmp.eq.s32.totalorder %s46, 0
      %s49 = sadd.s32 %s48, 1
      %s50 = scalar_select %p47, %s48, %s49
      %p53 = pneg %p47
      %p54 = scmp.eq.s32.totalorder %s20, 1
      %p55 = por %p53, %p54
      %p56 = scmp.ne.s32.totalorder %s48, %s51
      %p57 = scmp.eq.s32.totalorder %s20, 0
      %p58 = por %p56, %p57
      %p59 = scmp.ne.s32.totalorder %s48, %s51
      %p60 = scmp.eq.s32.totalorder %s25, 1
      %p61 = por %p59, %p60
      %p62 = scmp.ne.s32.totalorder %s51, %s52
      %p63 = scmp.eq.s32.totalorder %s25, 0
      %p64 = por %p62, %p63
      %p65 = scmp.ne.s32.totalorder %s51, %s52
      %p66 = scmp.eq.s32.totalorder %s26, 1
      %p67 = por %p65, %p66
      %p69 = scmp.ne.s32.totalorder %s52, %s68
      %p70 = scmp.eq.s32.totalorder %s26, 0
      %p71 = por %p69, %p70
      %s73 = sadd.s32 %s72, 1
      %p76 = scmp.eq.s32.totalorder %s20, 1
      %p77 = scmp.ne.s32.totalorder %s72, %s74
      %p78 = scmp.eq.s32.totalorder %s20, 0
      %p79 = por %p77, %p78
      %p80 = scmp.ne.s32.totalorder %s72, %s74
      %p81 = scmp.eq.s32.totalorder %s25, 1
      %p82 = por %p80, %p81
      %p83 = scmp.ne.s32.totalorder %s74, %s75
      %p84 = scmp.eq.s32.totalorder %s25, 0
      %p85 = por %p83, %p84
      %p86 = scmp.ne.s32.totalorder %s74, %s75
      %p87 = scmp.eq.s32.totalorder %s26, 1
      %p88 = por %p86, %p87
      %p90 = scmp.ne.s32.totalorder %s75, %s89
      %p91 = scmp.eq.s32.totalorder %s26, 0
      %p92 = por %p90, %p91
      %s94 = sadd.s32 %s93, 1
      %p97 = scmp.eq.s32.totalorder %s20, 1
      %p98 = scmp.ne.s32.totalorder %s93, %s95
      %p99 = scmp.eq.s32.totalorder %s20, 0
      %p100 = por %p98, %p99
      %p101 = scmp.ne.s32.totalorder %s93, %s95
      %p102 = scmp.eq.s32.totalorder %s25, 1
      %p103 = por %p101, %p102
      %p104 = scmp.ne.s32.totalorder %s95, %s96
      %p105 = scmp.eq.s32.totalorder %s25, 0
      %p106 = por %p104, %p105
      %p107 = scmp.ne.s32.totalorder %s95, %s96
      %p108 = scmp.eq.s32.totalorder %s26, 1
      %p109 = por %p107, %p108
      %p111 = scmp.ne.s32.totalorder %s96, %s110
      %p112 = scmp.eq.s32.totalorder %s26, 0
      %p113 = por %p111, %p112
      %s115 = sadd.s32 %s114, 1
      %p118 = scmp.eq.s32.totalorder %s20, 1
      %p119 = scmp.ne.s32.totalorder %s114, %s116
      %p120 = scmp.eq.s32.totalorder %s20, 0
      %p121 = por %p119, %p120
      %p122 = scmp.ne.s32.totalorder %s114, %s116
      %p123 = scmp.eq.s32.totalorder %s25, 1
      %p124 = por %p122, %p123
      %p125 = scmp.ne.s32.totalorder %s116, %s117
      %p126 = scmp.eq.s32.totalorder %s25, 0
      %p127 = por %p125, %p126
      %p128 = scmp.ne.s32.totalorder %s116, %s117
      %p129 = scmp.eq.s32.totalorder %s26, 1
      %p130 = por %p128, %p129
      %p132 = scmp.ne.s32.totalorder %s117, %s131
      %p133 = scmp.eq.s32.totalorder %s26, 0
      %p134 = por %p132, %p133
      %s135 = ssub.s32 %s27, %s39
      %s136 = ssub.s32 %s28, %s35
      %s137 = sor.u32 %s135, %s136
      %p138 = scmp.eq.s32.totalorder %s137, 0
      %s140 = sadd.s32 %s139, 1
      %s141 = scalar_select %p138, %s139, %s140
      %p144 = pneg %p138
      %p145 = scmp.eq.s32.totalorder %s20, 1
      %p146 = por %p144, %p145
      %p147 = scmp.ne.s32.totalorder %s139, %s142
      %p148 = scmp.eq.s32.totalorder %s20, 0
      %p149 = por %p147, %p148
      %p150 = scmp.ne.s32.totalorder %s139, %s142
      %p151 = scmp.eq.s32.totalorder %s25, 1
      %p152 = por %p150, %p151
      %p153 = scmp.ne.s32.totalorder %s142, %s143
      %p154 = scmp.eq.s32.totalorder %s25, 0
      %p155 = por %p153, %p154
      %p156 = scmp.ne.s32.totalorder %s142, %s143
      %p157 = scmp.eq.s32.totalorder %s26, 1
      %p158 = por %p156, %p157
      %p160 = scmp.ne.s32.totalorder %s143, %s159
      %p161 = scmp.eq.s32.totalorder %s26, 0
      %p162 = por %p160, %p161
      %s163 = ssub.s32 %s27, %s39
      %p164 = scmp.eq.s32.totalorder %s163, 0
      %s166 = sadd.s32 %s165, 1
      %s167 = scalar_select %p164, %s165, %s166
      %p170 = pneg %p164
      %p171 = scmp.eq.s32.totalorder %s20, 1
      %p172 = por %p170, %p171
      %p173 = scmp.ne.s32.totalorder %s165, %s168
      %p174 = scmp.eq.s32.totalorder %s20, 0
      %p175 = por %p173, %p174
      %p176 = scmp.ne.s32.totalorder %s165, %s168
      %p177 = scmp.eq.s32.totalorder %s25, 1
      %p178 = por %p176, %p177
      %p179 = scmp.ne.s32.totalorder %s168, %s169
      %p180 = scmp.eq.s32.totalorder %s25, 0
      %p181 = por %p179, %p180
      %p182 = scmp.ne.s32.totalorder %s168, %s169
      %p183 = scmp.eq.s32.totalorder %s26, 1
      %p184 = por %p182, %p183
      %p186 = scmp.ne.s32.totalorder %s169, %s185
      %p187 = scmp.eq.s32.totalorder %s26, 0
      %p188 = por %p186, %p187
      %s189 = ssub.s32 %s27, %s39
      %p190 = scmp.eq.s32.totalorder %s189, 0
      %s192 = sadd.s32 %s191, 1
      %s193 = scalar_select %p190, %s191, %s192
      %p196 = pneg %p190
      %p197 = scmp.eq.s32.totalorder %s20, 1
      %p198 = por %p196, %p197
      %p199 = scmp.ne.s32.totalorder %s191, %s194
      %p200 = scmp.eq.s32.totalorder %s20, 0
      %p201 = por %p199, %p200
      %p202 = scmp.ne.s32.totalorder %s191, %s194
      %p203 = scmp.eq.s32.totalorder %s25, 1
      %p204 = por %p202, %p203
      %p205 = scmp.ne.s32.totalorder %s194, %s195
      %p206 = scmp.eq.s32.totalorder %s25, 0
      %p207 = por %p205, %p206
      %p208 = scmp.ne.s32.totalorder %s194, %s195
      %p209 = scmp.eq.s32.totalorder %s26, 1
      %p210 = por %p208, %p209
      %p212 = scmp.ne.s32.totalorder %s195, %s211
      %p213 = scmp.eq.s32.totalorder %s26, 0
      %p214 = por %p212, %p213
      %s215 = ssub.s32 %s27, %s39
      %p216 = scmp.eq.s32.totalorder %s215, 0
      %s218 = sadd.s32 %s217, 1
      %s219 = scalar_select %p216, %s217, %s218
      %p222 = pneg %p216
      %p223 = scmp.eq.s32.totalorder %s20, 1
      %p224 = por %p222, %p223
      %p225 = scmp.ne.s32.totalorder %s217, %s220
      %p226 = scmp.eq.s32.totalorder %s20, 0
      %p227 = por %p225, %p226
      %p228 = scmp.ne.s32.totalorder %s217, %s220
      %p229 = scmp.eq.s32.totalorder %s25, 1
      %p230 = por %p228, %p229
      %p231 = scmp.ne.s32.totalorder %s220, %s221
      %p232 = scmp.eq.s32.totalorder %s25, 0
      %p233 = por %p231, %p232
      %p234 = scmp.ne.s32.totalorder %s220, %s221
      %p235 = scmp.eq.s32.totalorder %s26, 1
      %p236 = por %p234, %p235
      %p238 = scmp.ne.s32.totalorder %s221, %s237
      %p239 = scmp.eq.s32.totalorder %s26, 0
      %p240 = por %p238, %p239
      %p241 = scmp.le.s32.totalorder 1, %s20
      %p242 = scmp.lt.s32.totalorder %s20, 3
      %p243 = pnand %p241, %p242
      %p244 = pneg %p243
      // Predicated region
      $region9: #{tpu_custom_call.1} parent=5 // pred_check
        _
      $region10: #{tpu_custom_call.1} parent=5 // pred_check_branch
        %246 = sbr.rel (%p243) target = $region12
      $region11: #{tpu_custom_call.1} parent=5 // pred_region
        %s247 = ssub.s32 %s20, 1
        // Predicated region
        $region13: #{tpu_custom_call.1} parent=11 // pred_check
          %p248 = pneg %p85
        $region14: #{tpu_custom_call.1} parent=11 // pred_check_branch
          %250 = sbr.rel (%p248) target = $region16
        $region15: #{tpu_custom_call.1} parent=11 // pred_region
          _
        $region16: #{tpu_custom_call.1} parent=11 // pred_fallthru
          _
        // Predicated region
        $region17: #{tpu_custom_call.1} parent=11 // pred_check
          %p251 = pneg %p106
        $region18: #{tpu_custom_call.1} parent=11 // pred_check_branch
          %253 = sbr.rel (%p251) target = $region20
        $region19: #{tpu_custom_call.1} parent=11 // pred_region
          _
        $region20: #{tpu_custom_call.1} parent=11 // pred_fallthru
          _
        // Predicated region
        $region21: #{tpu_custom_call.1} parent=11 // pred_check
          %p254 = pneg %p127
        $region22: #{tpu_custom_call.1} parent=11 // pred_check_branch
          %256 = sbr.rel (%p254) target = $region24
        $region23: #{tpu_custom_call.1} parent=11 // pred_region
          _
        $region24: #{tpu_custom_call.1} parent=11 // pred_fallthru
          _
      $region12: #{tpu_custom_call.1} parent=5 // pred_fallthru
        _
      %p257 = scmp.lt.s32.totalorder %s20, 2
      // Predicated region
      $region25: #{tpu_custom_call.1} parent=5 // pred_check
        %p258 = pneg %p257
      $region26: #{tpu_custom_call.1} parent=5 // pred_check_branch
        %260 = sbr.rel (%p258) target = $region28
      $region27: #{tpu_custom_call.1} parent=5 // pred_region
        // Predicated region
        $region29: #{tpu_custom_call.1} parent=27 // pred_check
          %p261 = pneg %p58
        $region30: #{tpu_custom_call.1} parent=27 // pred_check_branch
          %263 = sbr.rel (%p261) target = $region32
        $region31: #{tpu_custom_call.1} parent=27 // pred_region
          %s264 = sadd.s32 %s27, %s28
          %p265 = scmp.lt.s32.totalorder %s264, 1
          %s266 = scalar_select %p265, %s264, 1
          %s267 = smul.u32 16, %s266
          %s268 = ssub.s32 25, %s267
          %p269 = scmp.lt.s32.totalorder %s268, 16
          %s270 = scalar_select %p269, %s268, 16
          %s271 = smul.u32 8, %s270
          %s272 = smul.u32 %s271, 2
          %p273 = scmp.lt.s32.totalorder %s267, 24
          %s274 = scalar_select %p273, %s267, 24
          %s275 = smul.addr %s274, 2
          %s276 = smul.addr %s275, 8
          %s277 = scalar_lea.vmem %s0, %s276
          %s278 = sadd.s32 %s27, %s28
          %p279 = scmp.lt.s32.totalorder %s278, 1
          %s280 = scalar_select %p279, %s278, 1
          %s281 = smul.u32 16, %s280
          %s282 = ssub.s32 25, %s281
          %p283 = scmp.lt.s32.totalorder %s282, 16
          %s284 = scalar_select %p283, %s282, 16
          %s285 = smul.u32 8, %s284
          %s286 = smul.u32 %s285, 2
        $region32: #{tpu_custom_call.1} parent=27 // pred_fallthru
          _
      $region28: #{tpu_custom_call.1} parent=5 // pred_fallthru
        _
      %p287 = scmp.le.s32.totalorder 1, %s20
      %p288 = scmp.lt.s32.totalorder %s20, 3
      %p289 = pnand %p287, %p288
      %p290 = pneg %p289
      // Predicated region
      $region33: #{tpu_custom_call.1} parent=5 // pred_check
        _
      $region34: #{tpu_custom_call.1} parent=5 // pred_check_branch
        %292 = sbr.rel (%p289) target = $region36
      $region35: #{tpu_custom_call.1} parent=5 // pred_region
        %s293 = ssub.s32 %s20, 1
        %s294 = sadd.s32 %s29, %s30
        %p295 = scmp.lt.s32.totalorder %s294, 1
        %s296 = scalar_select %p295, %s294, 1
        %s297 = smul.u32 16, %s296
        %s298 = ssub.s32 25, %s297
        %p299 = scmp.lt.s32.totalorder %s298, 16
        %s300 = scalar_select %p299, %s298, 16
        %s301 = smul.u32 8, %s300
        %s302 = smul.u32 %s301, 2
        %p303 = scmp.lt.s32.totalorder %s297, 24
        %s304 = scalar_select %p303, %s297, 24
        %s305 = smul.addr %s304, 2
        %s306 = smul.addr %s305, 8
        %s307 = scalar_lea.vmem %s0, %s306
        %p308 = pneg %p64
        %p309 = pneg %p61
        %p310 = pneg %p85
        %p311 = pneg %p82
        %p312 = pneg %p106
        %p313 = pneg %p103
        %p314 = pneg %p127
        %p315 = pneg %p124
        %p316 = pneg %p155
        %p317 = pneg %p152
        %s318 = sand.u32 %s142, 1
        %s319 = scalar_lea.sflag [#allocation6], %s318
        %s320 = sand.u32 %s142, 1
        %s321 = scalar_lea.vmem [#allocation5], %s320
        %p322 = pneg %p181
        %p323 = pneg %p178
        %s324 = sand.u32 %s168, 1
        %s325 = scalar_lea.sflag [#allocation8], %s324
        %s326 = sand.u32 %s168, 1
        %s327 = smul.addr %s326, 2
        %s328 = scalar_lea.vmem [#allocation7], %s327
        %p329 = pneg %p207
        %p330 = pneg %p204
        %p331 = scmp.lt.s32.totalorder %s29, 1
        %s332 = scalar_select %p331, %s29, 1
        %s333 = scalar_lea.vmem %s6, %s332
        %p334 = pneg %p233
        %p335 = pneg %p230
        %p336 = scmp.lt.s32.totalorder %s29, 1
        %s337 = scalar_select %p336, %s29, 1
        %s338 = scalar_lea.vmem %s7, %s337
        %s339 = sadd.s32 %s29, %s30
        %p340 = scmp.lt.s32.totalorder %s339, 1
        %s341 = scalar_select %p340, %s339, 1
        %s342 = smul.u32 16, %s341
        %s343 = ssub.s32 25, %s342
        %p344 = scmp.lt.s32.totalorder %s343, 16
        %s345 = scalar_select %p344, %s343, 16
        %s346 = smul.u32 8, %s345
        %s347 = smul.u32 %s346, 2
        %p348 = scmp.lt.s32.totalorder %s342, 24
        %s349 = scalar_select %p348, %s342, 24
        %s350 = smul.addr %s349, 2
        %s351 = smul.addr %s350, 8
        %s352 = scalar_lea.vmem %s0, %s351
        %s353 = sadd.s32 %s29, %s30
        %p354 = scmp.lt.s32.totalorder %s353, 1
        %s355 = scalar_select %p354, %s353, 1
        %s356 = smul.u32 16, %s355
        %s357 = ssub.s32 25, %s356
        %p358 = scmp.lt.s32.totalorder %s357, 16
        %s359 = scalar_select %p358, %s357, 16
        %s360 = smul.u32 8, %s359
        %s361 = smul.u32 %s360, 2
        %p362 = scmp.lt.s32.totalorder %s29, 1
        %s363 = scalar_select %p362, %s29, 1
        %s364 = scalar_lea.vmem %s6, %s363
        %p365 = scmp.lt.s32.totalorder %s29, 1
        %s366 = scalar_select %p365, %s29, 1
        %s367 = scalar_lea.vmem %s7, %s366
        %p368 = scmp.eq.s32.totalorder %s30, 0
        // Predicated region
        $region37: #{tpu_custom_call.1} parent=35 // pred_check
          %p369 = pneg %p368
        $region38: #{tpu_custom_call.1} parent=35 // pred_check_branch
          %371 = sbr.rel (%p369) target = $region40
        $region39: #{tpu_custom_call.1} parent=35 // pred_region
          %vm372 = vcmask 0
          %373 = vst.msk [vmem:[#allocation2] sm:$0x1] %vm372, -inf
          %374 = vst.msk [vmem:[#allocation3] sm:$0x1] %vm372, 0.0
          %v375 = vlaneseq
          %vm376 = vcmp.ge.s32.totalorder %v375, 0
          %vm377 = vcmp.lt.s32.totalorder %v375, 192
          %vm378 = vmand %vm376, %vm377
          %379 = vst.msk [vmem:[#allocation4] sm:$0x3] %vm378, 0.0
        $region40: #{tpu_custom_call.1} parent=35 // pred_fallthru
          _
        %s380 = sadd.s32 %s29, %s30
        %s381 = smul.u32 %s380, 128
        %v382 = vld [vmem:[%s352] sm:$0xff]
        %v383 = vld [vmem:[%s352 + $0x8] sm:$0xff]
        %v384 = vld [vmem:[%s352 + $0x10] sm:$0xff]
        %v385 = vld [vmem:[%s352 + $0x18] sm:$0xff]
        %v386 = vld [vmem:[%s352 + $0x20] sm:$0xff]
        %v387 = vld [vmem:[%s352 + $0x28] sm:$0xff]
        %v388 = vld [vmem:[%s352 + $0x30] sm:$0xff]
        %v389 = vld [vmem:[%s352 + $0x38] sm:$0xff]
        %v390 = vld [vmem:[%s352 + $0x40] sm:$0xff]
        %v391 = vld [vmem:[%s352 + $0x48] sm:$0xff]
        %v392 = vld [vmem:[%s352 + $0x50] sm:$0xff]
        %v393 = vld [vmem:[%s352 + $0x58] sm:$0xff]
        %v394 = vld [vmem:[%s352 + $0x60] sm:$0xff]
        %v395 = vld [vmem:[%s352 + $0x68] sm:$0xff]
        %v396 = vld [vmem:[%s352 + $0x70] sm:$0xff]
        %v397 = vld [vmem:[%s352 + $0x78] sm:$0xff]
        %v398 = vld [vmem:[%s352 + $0x80] sm:$0xff]
        %v399 = vld [vmem:[%s352 + $0x88] sm:$0xff]
        %v400 = vld [vmem:[%s352 + $0x90] sm:$0xff]
        %v401 = vld [vmem:[%s352 + $0x98] sm:$0xff]
        %v402 = vld [vmem:[%s352 + $0xa0] sm:$0xff]
        %v403 = vld [vmem:[%s352 + $0xa8] sm:$0xff]
        %v404 = vld [vmem:[%s352 + $0xb0] sm:$0xff]
        %v405 = vld [vmem:[%s352 + $0xb8] sm:$0xff]
        %v406 = vld [vmem:[%s352 + $0xc0] sm:$0xff]
        %v407 = vld [vmem:[%s352 + $0xc8] sm:$0xff]
        %v408 = vld [vmem:[%s352 + $0xd0] sm:$0xff]
        %v409 = vld [vmem:[%s352 + $0xd8] sm:$0xff]
        %v410 = vld [vmem:[%s352 + $0xe0] sm:$0xff]
        %v411 = vld [vmem:[%s352 + $0xe8] sm:$0xff]
        %v412 = vld [vmem:[%s352 + $0xf0] sm:$0xff]
        %v413 = vld [vmem:[%s352 + $0xf8] sm:$0xff]
        %v414 = vlaneseq
        %v415 = vshrl.u32 %v414, 7
        %v416 = vadd.s32 %v415, 8
        %v417 = vadd.s32 %v415, 16
        %v418 = vadd.s32 %v415, 24
        %v419 = vadd.s32 %v415, 32
        %v420 = vadd.s32 %v415, 40
        %v421 = vadd.s32 %v415, 48
        %v422 = vadd.s32 %v415, 56
        %v423 = vadd.s32 %v415, 64
        %v424 = vadd.s32 %v415, 72
        %v425 = vadd.s32 %v415, 80
        %v426 = vadd.s32 %v415, 88
        %v427 = vadd.s32 %v415, 96
        %v428 = vadd.s32 %v415, 104
        %v429 = vadd.s32 %v415, 112
        %v430 = vadd.s32 %v415, 120
        %v431 = vstv %s381
        %v432 = vadd.s32 %v415, %v431
        %v433 = vadd.s32 %v416, %v431
        %v434 = vadd.s32 %v417, %v431
        %v435 = vadd.s32 %v418, %v431
        %v436 = vadd.s32 %v419, %v431
        %v437 = vadd.s32 %v420, %v431
        %v438 = vadd.s32 %v421, %v431
        %v439 = vadd.s32 %v422, %v431
        %v440 = vadd.s32 %v423, %v431
        %v441 = vadd.s32 %v424, %v431
        %v442 = vadd.s32 %v425, %v431
        %v443 = vadd.s32 %v426, %v431
        %v444 = vadd.s32 %v427, %v431
        %v445 = vadd.s32 %v428, %v431
        %v446 = vadd.s32 %v429, %v431
        %v447 = vadd.s32 %v430, %v431
        %vm448 = vcmp.lt.s32.totalorder %v432, 200
        %vm449 = vcmp.lt.s32.totalorder %v433, 200
        %vm450 = vcmp.lt.s32.totalorder %v434, 200
        %vm451 = vcmp.lt.s32.totalorder %v435, 200
        %vm452 = vcmp.lt.s32.totalorder %v436, 200
        %vm453 = vcmp.lt.s32.totalorder %v437, 200
        %vm454 = vcmp.lt.s32.totalorder %v438, 200
        %vm455 = vcmp.lt.s32.totalorder %v439, 200
        %vm456 = vcmp.lt.s32.totalorder %v440, 200
        %vm457 = vcmp.lt.s32.totalorder %v441, 200
        %vm458 = vcmp.lt.s32.totalorder %v442, 200
        %vm459 = vcmp.lt.s32.totalorder %v443, 200
        %vm460 = vcmp.lt.s32.totalorder %v444, 200
        %vm461 = vcmp.lt.s32.totalorder %v445, 200
        %vm462 = vcmp.lt.s32.totalorder %v446, 200
        %vm463 = vcmp.lt.s32.totalorder %v447, 200
        %v464 = vsel %vm448, 1, 0
        %v465 = vsel %vm449, 1, 0
        %v466 = vsel %vm450, 1, 0
        %v467 = vsel %vm451, 1, 0
        %v468 = vsel %vm452, 1, 0
        %v469 = vsel %vm453, 1, 0
        %v470 = vsel %vm454, 1, 0
        %v471 = vsel %vm455, 1, 0
        %v472 = vsel %vm456, 1, 0
        %v473 = vsel %vm457, 1, 0
        %v474 = vsel %vm458, 1, 0
        %v475 = vsel %vm459, 1, 0
        %v476 = vsel %vm460, 1, 0
        %v477 = vsel %vm461, 1, 0
        %v478 = vsel %vm462, 1, 0
        %v479 = vsel %vm463, 1, 0
        %vm480 = vcmp.eq.s32.totalorder %v464, 1
        %vm481 = vcmp.eq.s32.totalorder %v465, 1
        %vm482 = vcmp.eq.s32.totalorder %v466, 1
        %vm483 = vcmp.eq.s32.totalorder %v467, 1
        %vm484 = vcmp.eq.s32.totalorder %v468, 1
        %vm485 = vcmp.eq.s32.totalorder %v469, 1
        %vm486 = vcmp.eq.s32.totalorder %v470, 1
        %vm487 = vcmp.eq.s32.totalorder %v471, 1
        %vm488 = vcmp.eq.s32.totalorder %v472, 1
        %vm489 = vcmp.eq.s32.totalorder %v473, 1
        %vm490 = vcmp.eq.s32.totalorder %v474, 1
        %vm491 = vcmp.eq.s32.totalorder %v475, 1
        %vm492 = vcmp.eq.s32.totalorder %v476, 1
        %vm493 = vcmp.eq.s32.totalorder %v477, 1
        %vm494 = vcmp.eq.s32.totalorder %v478, 1
        %vm495 = vcmp.eq.s32.totalorder %v479, 1
        %v496 = vsel %vm480, %v382, 0.0
        %v497 = vsel %vm480, %v383, 0.0
        %v498 = vsel %vm481, %v384, 0.0
        %v499 = vsel %vm481, %v385, 0.0
        %v500 = vsel %vm482, %v386, 0.0
        %v501 = vsel %vm482, %v387, 0.0
        %v502 = vsel %vm483, %v388, 0.0
        %v503 = vsel %vm483, %v389, 0.0
        %v504 = vsel %vm484, %v390, 0.0
        %v505 = vsel %vm484, %v391, 0.0
        %v506 = vsel %vm485, %v392, 0.0
        %v507 = vsel %vm485, %v393, 0.0
        %v508 = vsel %vm486, %v394, 0.0
        %v509 = vsel %vm486, %v395, 0.0
        %v510 = vsel %vm487, %v396, 0.0
        %v511 = vsel %vm487, %v397, 0.0
        %v512 = vsel %vm488, %v398, 0.0
        %v513 = vsel %vm488, %v399, 0.0
        %v514 = vsel %vm489, %v400, 0.0
        %v515 = vsel %vm489, %v401, 0.0
        %v516 = vsel %vm490, %v402, 0.0
        %v517 = vsel %vm490, %v403, 0.0
        %v518 = vsel %vm491, %v404, 0.0
        %v519 = vsel %vm491, %v405, 0.0
        %v520 = vsel %vm492, %v406, 0.0
        %v521 = vsel %vm492, %v407, 0.0
        %v522 = vsel %vm493, %v408, 0.0
        %v523 = vsel %vm493, %v409, 0.0
        %v524 = vsel %vm494, %v410, 0.0
        %v525 = vsel %vm494, %v411, 0.0
        %v526 = vsel %vm495, %v412, 0.0
        %v527 = vsel %vm495, %v413, 0.0
        %v528 = vld [vmem:[%s1] sm:$0xff]
        %v529 = vld [vmem:[%s1 + $0x8] sm:$0xff]
        %v530 = vld [vmem:[%s1 + $0x10] sm:$0xff]
        %v531 = vld [vmem:[%s1 + $0x18] sm:$0xff]
        %v532 = vld [vmem:[%s1 + $0x20] sm:$0xff]
        %v533 = vld [vmem:[%s1 + $0x28] sm:$0xff]
        %v534 = vld [vmem:[%s1 + $0x30] sm:$0xff]
        %v535 = vld [vmem:[%s1 + $0x38] sm:$0xff]
        %v536 = vld [vmem:[%s1 + $0x40] sm:$0xff]
        %v537 = vld [vmem:[%s1 + $0x48] sm:$0xff]
        %v538 = vld [vmem:[%s1 + $0x50] sm:$0xff]
        %v539 = vld [vmem:[%s1 + $0x58] sm:$0xff]
        %v540 = vld [vmem:[%s1 + $0x60] sm:$0xff]
        %v541 = vld [vmem:[%s1 + $0x68] sm:$0xff]
        %v542 = vld [vmem:[%s1 + $0x70] sm:$0xff]
        %v543 = vld [vmem:[%s1 + $0x78] sm:$0xff]
        %v544 = vld [vmem:[%s1 + $0x80] sm:$0xff]
        %v545 = vld [vmem:[%s1 + $0x88] sm:$0xff]
        %v546 = vld [vmem:[%s1 + $0x90] sm:$0xff]
        %v547 = vld [vmem:[%s1 + $0x98] sm:$0xff]
        %v548 = vld [vmem:[%s1 + $0xa0] sm:$0xff]
        %v549 = vld [vmem:[%s1 + $0xa8] sm:$0xff]
        %v550 = vld [vmem:[%s1 + $0xb0] sm:$0xff]
        %v551 = vld [vmem:[%s1 + $0xb8] sm:$0xff]
        %v552 = vld [vmem:[%s2] sm:$0x1]
        %v554 = vperm.slane %v552, 0
        %vm556 = vcmask 523264
        %v558 = vsel %vm556, %v497, 0
        %v561 = vsel %vm556, %v499, 0
        %v564 = vsel %vm556, %v501, 0
        %v567 = vsel %vm556, %v503, 0
        %v570 = vsel %vm556, %v505, 0
        %v573 = vsel %vm556, %v507, 0
        %v576 = vsel %vm556, %v509, 0
        %v579 = vsel %vm556, %v511, 0
        %v582 = vsel %vm556, %v513, 0
        %v585 = vsel %vm556, %v515, 0
        %v588 = vsel %vm556, %v517, 0
        %v591 = vsel %vm556, %v519, 0
        %v594 = vsel %vm556, %v521, 0
        %v597 = vsel %vm556, %v523, 0
        %v600 = vsel %vm556, %v525, 0
        %v603 = vsel %vm556, %v527, 0
        %605 = vmatpush.msra.mxu0 %v543
        %606 = vmatpush.msra.mxu0 %v542
        %607 = vmatpush.msra.mxu0 %v541
        %608 = vmatpush.msra.mxu0 %v540
        %609 = vmatpush.msra.mxu0 %v539
        %610 = vmatpush.msra.mxu0 %v538
        %611 = vmatpush.msra.mxu0 %v537
        %612 = vmatpush.msra.mxu0 %v536
        %613 = vmatpush.msra.mxu0 %v535
        %614 = vmatpush.msra.mxu0 %v534
        %615 = vmatpush.msra.mxu0 %v533
        %616 = vmatpush.msra.mxu0 %v532
        %617 = vmatpush.msra.mxu0 %v531
        %618 = vmatpush.msra.mxu0 %v530
        %619 = vmatpush.msra.mxu0 %v529
        %620 = vmatpush.msra.mxu0 %v528
        %621 = vmatmul.f32.gmra.mxu0 %v496
        %v622 = vpop.f32.mrf.mxu0
        %v623 = vadd.f32 %v554, %v622
        %624 = vmatmul.f32.gmra.mxu0 %v498
        %v625 = vpop.f32.mrf.mxu0
        %v626 = vadd.f32 %v554, %v625
        %627 = vmatmul.f32.gmra.mxu0 %v500
        %v628 = vpop.f32.mrf.mxu0
        %v629 = vadd.f32 %v554, %v628
        %630 = vmatmul.f32.gmra.mxu0 %v502
        %v631 = vpop.f32.mrf.mxu0
        %v632 = vadd.f32 %v554, %v631
        %633 = vmatmul.f32.gmra.mxu0 %v504
        %v634 = vpop.f32.mrf.mxu0
        %v635 = vadd.f32 %v554, %v634
        %636 = vmatmul.f32.gmra.mxu0 %v506
        %v637 = vpop.f32.mrf.mxu0
        %v638 = vadd.f32 %v554, %v637
        %639 = vmatmul.f32.gmra.mxu0 %v508
        %v640 = vpop.f32.mrf.mxu0
        %v641 = vadd.f32 %v554, %v640
        %642 = vmatmul.f32.gmra.mxu0 %v510
        %v643 = vpop.f32.mrf.mxu0
        %v644 = vadd.f32 %v554, %v643
        %645 = vmatmul.f32.gmra.mxu0 %v512
        %v646 = vpop.f32.mrf.mxu0
        %v647 = vadd.f32 %v554, %v646
        %648 = vmatmul.f32.gmra.mxu0 %v514
        %v649 = vpop.f32.mrf.mxu0
        %v650 = vadd.f32 %v554, %v649
        %651 = vmatmul.f32.gmra.mxu0 %v516
        %v652 = vpop.f32.mrf.mxu0
        %v653 = vadd.f32 %v554, %v652
        %654 = vmatmul.f32.gmra.mxu0 %v518
        %v655 = vpop.f32.mrf.mxu0
        %v656 = vadd.f32 %v554, %v655
        %657 = vmatmul.f32.gmra.mxu0 %v520
        %v658 = vpop.f32.mrf.mxu0
        %v659 = vadd.f32 %v554, %v658
        %660 = vmatmul.f32.gmra.mxu0 %v522
        %v661 = vpop.f32.mrf.mxu0
        %v662 = vadd.f32 %v554, %v661
        %663 = vmatmul.f32.gmra.mxu0 %v524
        %v664 = vpop.f32.mrf.mxu0
        %v665 = vadd.f32 %v554, %v664
        %666 = vmatmul.f32.gmra.mxu0 %v526
        %v667 = vpop.f32.mrf.mxu0
        %v668 = vadd.f32 %v554, %v667
        %669 = vdwg.mxu0
        %670 = vmatpush.msra.mxu0 0.0
        %671 = vmatpush.msra.mxu0 0.0
        %672 = vmatpush.msra.mxu0 0.0
        %673 = vmatpush.msra.mxu0 0.0
        %674 = vmatpush.msra.mxu0 0.0
        %675 = vmatpush.msra.mxu0 0.0
        %676 = vmatpush.msra.mxu0 0.0
        %677 = vmatpush.msra.mxu0 0.0
        %678 = vmatpush.msra.mxu0 %v551
        %679 = vmatpush.msra.mxu0 %v550
        %680 = vmatpush.msra.mxu0 %v549
        %681 = vmatpush.msra.mxu0 %v548
        %682 = vmatpush.msra.mxu0 %v547
        %683 = vmatpush.msra.mxu0 %v546
        %684 = vmatpush.msra.mxu0 %v545
        %685 = vmatpush.msra.mxu0 %v544
        %686 = vmatmul.f32.gmra.mxu0 %v558
        %v687 = vpop.f32.mrf.mxu0
        %v688 = vadd.f32 %v623, %v687
        %689 = vmatmul.f32.gmra.mxu0 %v561
        %v690 = vpop.f32.mrf.mxu0
        %v691 = vadd.f32 %v626, %v690
        %692 = vmatmul.f32.gmra.mxu0 %v564
        %v693 = vpop.f32.mrf.mxu0
        %v694 = vadd.f32 %v629, %v693
        %695 = vmatmul.f32.gmra.mxu0 %v567
        %v696 = vpop.f32.mrf.mxu0
        %v697 = vadd.f32 %v632, %v696
        %698 = vmatmul.f32.gmra.mxu0 %v570
        %v699 = vpop.f32.mrf.mxu0
        %v700 = vadd.f32 %v635, %v699
        %701 = vmatmul.f32.gmra.mxu0 %v573
        %v702 = vpop.f32.mrf.mxu0
        %v703 = vadd.f32 %v638, %v702
        %704 = vmatmul.f32.gmra.mxu0 %v576
        %v705 = vpop.f32.mrf.mxu0
        %v706 = vadd.f32 %v641, %v705
        %707 = vmatmul.f32.gmra.mxu0 %v579
        %v708 = vpop.f32.mrf.mxu0
        %v709 = vadd.f32 %v644, %v708
        %710 = vmatmul.f32.gmra.mxu0 %v582
        %v711 = vpop.f32.mrf.mxu0
        %v712 = vadd.f32 %v647, %v711
        %713 = vmatmul.f32.gmra.mxu0 %v585
        %v714 = vpop.f32.mrf.mxu0
        %v715 = vadd.f32 %v650, %v714
        %716 = vmatmul.f32.gmra.mxu0 %v588
        %v717 = vpop.f32.mrf.mxu0
        %v718 = vadd.f32 %v653, %v717
        %719 = vmatmul.f32.gmra.mxu0 %v591
        %v720 = vpop.f32.mrf.mxu0
        %v721 = vadd.f32 %v656, %v720
        %722 = vmatmul.f32.gmra.mxu0 %v594
        %v723 = vpop.f32.mrf.mxu0
        %v724 = vadd.f32 %v659, %v723
        %725 = vmatmul.f32.gmra.mxu0 %v597
        %v726 = vpop.f32.mrf.mxu0
        %v727 = vadd.f32 %v662, %v726
        %728 = vmatmul.f32.gmra.mxu0 %v600
        %v729 = vpop.f32.mrf.mxu0
        %v730 = vadd.f32 %v665, %v729
        %731 = vmatmul.f32.gmra.mxu0 %v603
        %v732 = vpop.f32.mrf.mxu0
        %v733 = vadd.f32 %v668, %v732
        %734 = vdwg.mxu0
        %v735 = vtanh.pop %v688
        %v736 = vtanh.pop %v691
        %v737 = vtanh.pop %v694
        %v738 = vtanh.pop %v697
        %v739 = vtanh.pop %v700
        %v740 = vtanh.pop %v703
        %v741 = vtanh.pop %v706
        %v742 = vtanh.pop %v709
        %v743 = vtanh.pop %v712
        %v744 = vtanh.pop %v715
        %v745 = vtanh.pop %v718
        %v746 = vtanh.pop %v721
        %v747 = vtanh.pop %v724
        %v748 = vtanh.pop %v727
        %v749 = vtanh.pop %v730
        %v750 = vtanh.pop %v733
        %v751 = vld [vmem:[%s3] sm:$0x1]
        %752 = vmatpush.xpose.msra.mxu0 %v750
        %753 = vmatpush.xpose.msra.mxu0 %v749
        %754 = vmatpush.xpose.msra.mxu0 %v748
        %755 = vmatpush.xpose.msra.mxu0 %v747
        %756 = vmatpush.xpose.msra.mxu0 %v746
        %757 = vmatpush.xpose.msra.mxu0 %v745
        %758 = vmatpush.xpose.msra.mxu0 %v744
        %759 = vmatpush.xpose.msra.mxu0 %v743
        %760 = vmatpush.xpose.msra.mxu0 %v742
        %761 = vmatpush.xpose.msra.mxu0 %v741
        %762 = vmatpush.xpose.msra.mxu0 %v740
        %763 = vmatpush.xpose.msra.mxu0 %v739
        %764 = vmatpush.xpose.msra.mxu0 %v738
        %765 = vmatpush.xpose.msra.mxu0 %v737
        %766 = vmatpush.xpose.msra.mxu0 %v736
        %767 = vmatpush.xpose.msra.mxu0 %v735
        %768 = vmatmul.f32.gmra.mxu0 %v751
        %v769 = vpop.f32.mrf.mxu0
        %v770 = vadd.f32 0.0, %v769
        %771 = vdwg.mxu0
        %v772 = vlaneseq
        %v773 = vand.u32 %v772, 127
        %v774 = vadd.s32 %v773, %v431
        %vm775 = vcmp.lt.s32.totalorder %v774, 200
        %v776 = vsel %vm775, %v770, -inf
        %777 = vst [vmem:[%s321] sm:$0x1] %v776
        %v778 = vld [vmem:[#allocation2] sm:$0x1]
        %vm779 = vcmask 1040384
        %v780 = vsel %vm779, %v776, -inf
        %781 = vmax.xlane.f32.xlu0 %v780
        %v782 = vpop.xlane.xlu0 %781
        %v783 = vmax.f32 %v778, %v782
        %v784 = vmax.f32 %v783, -1e+30
        %v785 = vsub.f32 %v778, %v784
        %v786 = vmul.f32 %v785, 1.442695
        %v787 = vpow.pop %v786
        %789 = vset.pattern.permute.xlu0 0
        %790 = vperm.xlu0 %789, %v784
        %v791 = vpop.permute.xlu0 %790
        %v793 = vperm.slane %v791, 0
        %v794 = vsub.f32 %v776, %v793
        %v795 = vmul.f32 %v794, 1.442695
        %v796 = vpow.pop %v795
        %v797 = vld [vmem:[#allocation3] sm:$0x1]
        %v798 = vmul.f32 %v787, %v797
        %v799 = vsel %vm779, %v796, 0.0
        %800 = vadd.xlane.f32.xlu0 %v799
        %v801 = vpop.xlane.xlu0 %800
        %v802 = vadd.f32 %v798, %v801
        %vm803 = vcmask 0
        %804 = vst.msk [vmem:[#allocation3] sm:$0x1] %vm803, %v802
        %v805 = vld [vmem:[#allocation4] sm:$0x3]
        %807 = vset.pattern.permute.xlu0 0
        %808 = vperm.xlu0 %807, %v787
        %v809 = vpop.permute.xlu0 %808
        %v811 = vperm.slane %v809, 0
        %v812 = vmul.f32 %v811, %v805
        %813 = vmatpush.msra.mxu0 %v526
        %814 = vmatpush.msra.mxu0 %v524
        %815 = vmatpush.msra.mxu0 %v522
        %816 = vmatpush.msra.mxu0 %v520
        %817 = vmatpush.msra.mxu0 %v518
        %818 = vmatpush.msra.mxu0 %v516
        %819 = vmatpush.msra.mxu0 %v514
        %820 = vmatpush.msra.mxu0 %v512
        %821 = vmatpush.msra.mxu0 %v510
        %822 = vmatpush.msra.mxu0 %v508
        %823 = vmatpush.msra.mxu0 %v506
        %824 = vmatpush.msra.mxu0 %v504
        %825 = vmatpush.msra.mxu0 %v502
        %826 = vmatpush.msra.mxu0 %v500
        %827 = vmatpush.msra.mxu0 %v498
        %828 = vmatpush.msra.mxu0 %v496
        %829 = vmatmul.f32.gmra.mxu0 %v796
        %v830 = vpop.f32.mrf.mxu0
        %v831 = vadd.f32 0.0, %v830
        %832 = vdwg.mxu0
        %833 = vmatpush.msra.mxu0 %v527
        %834 = vmatpush.msra.mxu0 %v525
        %835 = vmatpush.msra.mxu0 %v523
        %836 = vmatpush.msra.mxu0 %v521
        %837 = vmatpush.msra.mxu0 %v519
        %838 = vmatpush.msra.mxu0 %v517
        %839 = vmatpush.msra.mxu0 %v515
        %840 = vmatpush.msra.mxu0 %v513
        %841 = vmatpush.msra.mxu0 %v511
        %842 = vmatpush.msra.mxu0 %v509
        %843 = vmatpush.msra.mxu0 %v507
        %844 = vmatpush.msra.mxu0 %v505
        %845 = vmatpush.msra.mxu0 %v503
        %846 = vmatpush.msra.mxu0 %v501
        %847 = vmatpush.msra.mxu0 %v499
        %848 = vmatpush.msra.mxu0 %v497
        %849 = vmatmul.f32.gmra.mxu0 %v796
        %v850 = vpop.f32.mrf.mxu0
        %v851 = vadd.f32 0.0, %v850
        %852 = vdwg.mxu0
        %v855 = vrot.slane %v851, 7
        %v856 = vsel %vm779, %v831, %v855
        %v858 = vadd.f32 %v812, %v856
        %v859 = vlaneseq
        %vm860 = vcmp.ge.s32.totalorder %v859, 0
        %vm861 = vcmp.lt.s32.totalorder %v859, 192
        %vm862 = vmand %vm860, %vm861
        %863 = vst.msk [vmem:[#allocation4] sm:$0x3] %vm862, %v858
        %864 = vst.msk [vmem:[#allocation2] sm:$0x1] %vm803, %v783
        // Predicated region
        $region41: #{tpu_custom_call.1} parent=35 // pred_check
          %p865 = pneg %p368
        $region42: #{tpu_custom_call.1} parent=35 // pred_check_branch
          %867 = sbr.rel (%p865) target = $region44
        $region43: #{tpu_custom_call.1} parent=35 // pred_region
          %v868 = vld [vmem:[#allocation4] sm:$0x3]
          %869 = vst.msk [vmem:[%s328] sm:$0x3] %vm862, %v868
          %v870 = vld [vmem:[#allocation2] sm:$0x1]
          %871 = vst.msk [vmem:[%s364] sm:$0x1] %vm803, %v870
          %v872 = vld [vmem:[#allocation3] sm:$0x1]
          %873 = vst.msk [vmem:[%s367] sm:$0x1] %vm803, %v872
        $region44: #{tpu_custom_call.1} parent=35 // pred_fallthru
          _
        %s874 = sand.u32 %s142, 1
        %s875 = scalar_lea.sflag [#allocation6], %s874
        %s876 = sand.u32 %s142, 1
        %s877 = scalar_lea.vmem [#allocation5], %s876
        %s878 = sand.u32 %s168, 1
        %s879 = scalar_lea.sflag [#allocation8], %s878
        %s880 = sand.u32 %s168, 1
        %s881 = smul.addr %s880, 2
        %s882 = scalar_lea.vmem [#allocation7], %s881
        %p883 = scmp.lt.s32.totalorder %s29, 1
        %s884 = scalar_select %p883, %s29, 1
        %s885 = scalar_lea.vmem %s6, %s884
        %p886 = scmp.lt.s32.totalorder %s29, 1
        %s887 = scalar_select %p886, %s29, 1
        %s888 = scalar_lea.vmem %s7, %s887
        // Predicated region
        $region45: #{tpu_custom_call.1} parent=35 // pred_check
          %p889 = pneg %p152
        $region46: #{tpu_custom_call.1} parent=35 // pred_check_branch
          %891 = sbr.rel (%p889) target = $region48
        $region47: #{tpu_custom_call.1} parent=35 // pred_region
          %893 = vsyncadd %s875, 0
          %s894 = sadd.s32 %s30, %s29
          %s895 = scalar_lea.hbm %s4, %s894
          %s897 = sshll.u32 %s877, 4
          %s898 = int_to_ptr.vmem [resolvable:$true] %s897
          %s899 = sshll.u32 %s895, 4
          %s900 = int_to_ptr.hbm [resolvable:$true] %s899
          %902 = dma.vmem_to_hbm [thread:$0]  %s898, 16, %s900, %s875
        $region48: #{tpu_custom_call.1} parent=35 // pred_fallthru
          _
        // Predicated region
        $region49: #{tpu_custom_call.1} parent=35 // pred_check
          %p903 = pneg %p178
        $region50: #{tpu_custom_call.1} parent=35 // pred_check_branch
          %905 = sbr.rel (%p903) target = $region52
        $region51: #{tpu_custom_call.1} parent=35 // pred_region
          %907 = vsyncadd %s879, 0
          %s908 = smul.addr %s29, 2
          %s909 = scalar_lea.hbm %s5, %s908
          %s911 = sshll.u32 %s882, 4
          %s912 = int_to_ptr.vmem [resolvable:$true] %s911
          %s913 = sshll.u32 %s909, 4
          %s914 = int_to_ptr.hbm [resolvable:$true] %s913
          %916 = dma.vmem_to_hbm [thread:$0]  %s912, 32, %s914, %s879
        $region52: #{tpu_custom_call.1} parent=35 // pred_fallthru
          _
        // Predicated region
        $region53: #{tpu_custom_call.1} parent=35 // pred_check
          %p917 = pneg %p204
        $region54: #{tpu_custom_call.1} parent=35 // pred_check_branch
          %919 = sbr.rel (%p917) target = $region56
        $region55: #{tpu_custom_call.1} parent=35 // pred_region
          _
        $region56: #{tpu_custom_call.1} parent=35 // pred_fallthru
          _
        // Predicated region
        $region57: #{tpu_custom_call.1} parent=35 // pred_check
          %p920 = pneg %p230
        $region58: #{tpu_custom_call.1} parent=35 // pred_check_branch
          %922 = sbr.rel (%p920) target = $region60
        $region59: #{tpu_custom_call.1} parent=35 // pred_region
          _
        $region60: #{tpu_custom_call.1} parent=35 // pred_fallthru
          _
      $region36: #{tpu_custom_call.1} parent=5 // pred_fallthru
        _
      %p923 = scmp.le.s32.totalorder 2, %s20
      // Predicated region
      $region61: #{tpu_custom_call.1} parent=5 // pred_check
        %p924 = pneg %p923
      $region62: #{tpu_custom_call.1} parent=5 // pred_check_branch
        %926 = sbr.rel (%p924) target = $region64
      $region63: #{tpu_custom_call.1} parent=5 // pred_region
        %s927 = ssub.s32 %s20, 2
        // Predicated region
        $region65: #{tpu_custom_call.1} parent=63 // pred_check
          %p928 = pneg %p158
        $region66: #{tpu_custom_call.1} parent=63 // pred_check_branch
          %930 = sbr.rel (%p928) target = $region68
        $region67: #{tpu_custom_call.1} parent=63 // pred_region
          %s931 = sand.u32 %s143, 1
          %s932 = scalar_lea.sflag [#allocation6], %s931
          %s933 = sand.u32 %s143, 1
          %s934 = scalar_lea.vmem [#allocation5], %s933
          %936 = dma.done %s932, 16
        $region68: #{tpu_custom_call.1} parent=63 // pred_fallthru
          _
        // Predicated region
        $region69: #{tpu_custom_call.1} parent=63 // pred_check
          %p937 = pneg %p184
        $region70: #{tpu_custom_call.1} parent=63 // pred_check_branch
          %939 = sbr.rel (%p937) target = $region72
        $region71: #{tpu_custom_call.1} parent=63 // pred_region
          %s940 = sand.u32 %s169, 1
          %s941 = scalar_lea.sflag [#allocation8], %s940
          %s942 = sand.u32 %s169, 1
          %s943 = smul.addr %s942, 2
          %s944 = scalar_lea.vmem [#allocation7], %s943
          %946 = dma.done %s941, 32
        $region72: #{tpu_custom_call.1} parent=63 // pred_fallthru
          _
        // Predicated region
        $region73: #{tpu_custom_call.1} parent=63 // pred_check
          %p947 = pneg %p210
        $region74: #{tpu_custom_call.1} parent=63 // pred_check_branch
          %949 = sbr.rel (%p947) target = $region76
        $region75: #{tpu_custom_call.1} parent=63 // pred_region
          %p950 = scmp.lt.s32.totalorder %s31, 1
          %s951 = scalar_select %p950, %s31, 1
          %s952 = scalar_lea.vmem %s6, %s951
        $region76: #{tpu_custom_call.1} parent=63 // pred_fallthru
          _
        // Predicated region
        $region77: #{tpu_custom_call.1} parent=63 // pred_check
          %p953 = pneg %p236
        $region78: #{tpu_custom_call.1} parent=63 // pred_check_branch
          %955 = sbr.rel (%p953) target = $region80
        $region79: #{tpu_custom_call.1} parent=63 // pred_region
          %p956 = scmp.lt.s32.totalorder %s31, 1
          %s957 = scalar_select %p956, %s31, 1
          %s958 = scalar_lea.vmem %s7, %s957
        $region80: #{tpu_custom_call.1} parent=63 // pred_fallthru
          _
      $region64: #{tpu_custom_call.1} parent=5 // pred_fallthru
        _
    $region6: #{tpu_custom_call.1} parent=1 // loop_footer
      %s24 = sadd.s32 1, %s20
    $region7: #{tpu_custom_call.1} parent=1 // loop_footer_branch
      %19 = sbr.rel target = $region3
    $region8: #{tpu_custom_call.1} parent=1 // loop_exit
      _
    %959 = vsyncpa [#allocation6], 1
    %s960 = scalar_lea.sflag [#allocation6], 1
    %961 = vsyncpa %s960, 1
    %962 = vsyncpa [#allocation8], 1
    %s963 = scalar_lea.sflag [#allocation8], 1
    %964 = vsyncpa %s963, 1

</llo_original>
